<compile_context>
chip_gen: v7x
topology: tpu7x:2x2x1
jax: 0.10.0
libtpu: 0.0.40
codegen_flags: <defaults>
</compile_context>

<pallas_src>
import jax
import jax.numpy as jnp
from jax.experimental import pallas as pl
from jax.experimental.pallas import tpu as pltpu


def _round_up(x, m):
    return ((x + m - 1) // m) * m


def init_params(key, latent_dim, feature_dim, hidden_dim):
    """nn.Linear default init: U(-1/sqrt(fan_in), 1/sqrt(fan_in)) for W and b."""
    enc_dims = [(feature_dim, hidden_dim),
                (hidden_dim, hidden_dim // 2),
                (hidden_dim // 2, hidden_dim // 4),
                (hidden_dim // 4, 2 * latent_dim)]
    dec_dims = [(latent_dim, hidden_dim // 4),
                (hidden_dim // 4, hidden_dim // 2),
                (hidden_dim // 2, hidden_dim),
                (hidden_dim, feature_dim)]
    keys = jax.random.split(key, 2 * (len(enc_dims) + len(dec_dims)))

    def make(klist, dims):
        layers = []
        for idx, (fan_in, fan_out) in enumerate(dims):
            bound = 1.0 / float(fan_in) ** 0.5
            w = jax.random.uniform(klist[2 * idx], (fan_out, fan_in),
                                   jnp.float32, -bound, bound)
            b = jax.random.uniform(klist[2 * idx + 1], (fan_out,),
                                   jnp.float32, -bound, bound)
            layers.append((w, b))
        return layers

    n_enc = len(enc_dims)
    return {
        "latent_dim": latent_dim,
        "feature_dim": feature_dim,
        "hidden_dim": hidden_dim,
        "enc": make(keys[: 2 * n_enc], enc_dims),
        "dec": make(keys[2 * n_enc:], dec_dims),
    }


def deep_vae_forward(x, eps, params, *, tb_max=128):
    """x: (B, feature_dim) f32, eps: (B, latent_dim) f32.
    Returns (reconstructed, mean, logvar) like DeepVAE.forward."""
    B, F = x.shape
    L = params["latent_dim"]
    H = params["hidden_dim"]
    enc, dec = params["enc"], params["dec"]
    assert eps.shape == (B, L)

    # --- prepare parameters ------------------------------------------------
    # Pre-transpose so the kernel computes x @ W^T + b (nn.Linear semantics),
    # and pre-cast matmul operands to bf16 (f32 accumulation in-kernel).
    w4, b4 = enc[3]
    wts = [enc[0][0].T, enc[1][0].T, enc[2][0].T,
           w4[:L].T, w4[L:].T,                       # mean head / logvar head
           dec[0][0].T, dec[1][0].T, dec[2][0].T, dec[3][0].T]
    wts = [w.astype(jnp.bfloat16) for w in wts]

    biases = [enc[0][1], enc[1][1], enc[2][1], b4[:L], b4[L:],
              dec[0][1], dec[1][1], dec[2][1], dec[3][1]]
    dmax = max(b.shape[0] for b in biases)
    bias_pack = jnp.stack(
        [jnp.pad(b, (0, dmax - b.shape[0])) for b in biases])   # (9, dmax) f32

    # --- batch tiling -------------------------------------------------------
    tb = min(tb_max, _round_up(B, 8))
    Bp = _round_up(B, tb)
    if Bp != B:
        x = jnp.pad(x, ((0, Bp - B), (0, 0)))
        eps = jnp.pad(eps, ((0, Bp - B), (0, 0)))
    grid = (Bp // tb,)

    # --- kernel -------------------------------------------------------------
    def kernel(x_ref, eps_ref,
               w1_ref, w2_ref, w3_ref, wm_ref, wv_ref,
               w5_ref, w6_ref, w7_ref, w8_ref,
               b_ref, rec_ref, mean_ref, logvar_ref):

        def dense(h, w_ref, row, width):
            # bf16 x bf16 matmul, f32 accumulate; bias add in f32.
            acc = jnp.dot(h.astype(jnp.bfloat16), w_ref[...],
                          preferred_element_type=jnp.float32)
            return acc + b_ref[row:row + 1, :width]

        xf = x_ref[...].astype(jnp.float32)

        # Encoder (Linear + ReLU x3, then the two linear heads).
        h = jnp.maximum(dense(xf, w1_ref, 0, H), 0.0)
        h = jnp.maximum(dense(h, w2_ref, 1, H // 2), 0.0)
        h = jnp.maximum(dense(h, w3_ref, 2, H // 4), 0.0)
        mean = dense(h, wm_ref, 3, L)
        logvar = dense(h, wv_ref, 4, L)

        # Reparameterize: z = eps * exp(0.5 * logvar) + mean   (exp on EUP).
        z = eps_ref[...].astype(jnp.float32) * jnp.exp(0.5 * logvar) + mean

        # Decoder (Linear + ReLU x3, then final Linear).
        h = jnp.maximum(dense(z, w5_ref, 5, H // 4), 0.0)
        h = jnp.maximum(dense(h, w6_ref, 6, H // 2), 0.0)
        h = jnp.maximum(dense(h, w7_ref, 7, H), 0.0)
        rec = dense(h, w8_ref, 8, F)

        rec_ref[...] = rec.astype(rec_ref.dtype)
        mean_ref[...] = mean.astype(mean_ref.dtype)
        logvar_ref[...] = logvar.astype(logvar_ref.dtype)

    # --- specs --------------------------------------------------------------
    row_spec = lambda d: pl.BlockSpec((tb, d), lambda i: (i, 0))
    full_spec = lambda shape: pl.BlockSpec(tuple(shape), lambda i: (0, 0))

    in_specs = ([row_spec(F), row_spec(L)]
                + [full_spec(w.shape) for w in wts]
                + [full_spec(bias_pack.shape)])
    out_specs = [row_spec(F), row_spec(L), row_spec(L)]
    out_shape = (jax.ShapeDtypeStruct((Bp, F), x.dtype),
                 jax.ShapeDtypeStruct((Bp, L), x.dtype),
                 jax.ShapeDtypeStruct((Bp, L), x.dtype))

    # --- cost estimate (helps XLA schedule surrounding ops) ------------------
    layer_dims = [(F, H), (H, H // 2), (H // 2, H // 4), (H // 4, 2 * L),
                  (L, H // 4), (H // 4, H // 2), (H // 2, H), (H, F)]
    flops = 2 * Bp * sum(i * o for i, o in layer_dims)
    wbytes = sum(w.size * w.dtype.itemsize for w in wts) + bias_pack.size * 4
    bytes_accessed = ((Bp * F + Bp * L) * 4            # x, eps in
                      + (Bp * F + 2 * Bp * L) * 4      # rec, mean, logvar out
                      + wbytes)
    cost = pl.CostEstimate(flops=int(flops),
                           transcendentals=int(Bp * L),
                           bytes_accessed=int(bytes_accessed))

    rec, mean, logvar = pl.pallas_call(
        kernel,
        out_shape=out_shape,
        grid_spec=pltpu.PrefetchScalarGridSpec(
            num_scalar_prefetch=0,
            grid=grid,
            in_specs=in_specs,
            out_specs=out_specs,
        ),
        compiler_params=pltpu.CompilerParams(
            dimension_semantics=("parallel",),
            vmem_limit_bytes=32 * 1024 * 1024),
        cost_estimate=cost,
    )(x, eps, *wts, bias_pack)

    return rec[:B], mean[:B], logvar[:B]


def reference(x, eps, params):
    """Pure-JAX f32 reference mirroring the PyTorch DeepVAE.forward."""
    h = x
    for w, b in params["enc"][:-1]:
        h = jnp.maximum(h @ w.T + b, 0.0)
    w, b = params["enc"][-1]
    encoded = h @ w.T + b
    L = params["latent_dim"]
    mean, logvar = encoded[:, :L], encoded[:, L:]
    z = eps * jnp.exp(0.5 * logvar) + mean
    h = z
    for w, b in params["dec"][:-1]:
        h = jnp.maximum(h @ w.T + b, 0.0)
    w, b = params["dec"][-1]
    rec = h @ w.T + b
    return rec, mean, logvar


if __name__ == "__main__":
    key = jax.random.PRNGKey(0)
    k_x, k_eps, k_p = jax.random.split(key, 3)

    latent_dim, feature_dim, hidden_dim, batch = 8, 32, 32, 16
    params = init_params(k_p, latent_dim, feature_dim, hidden_dim)
    x = jax.random.normal(k_x, (batch, feature_dim), jnp.float32)
    eps = jax.random.normal(k_eps, (batch, latent_dim), jnp.float32)

    rec, mean, logvar = deep_vae_forward(x, eps, params)
    jax.block_until_ready((rec, mean, logvar))

    rec_r, mean_r, logvar_r = reference(x, eps, params)
    assert rec.shape == (batch, feature_dim)
    assert mean.shape == (batch, latent_dim)
    assert logvar.shape == (batch, latent_dim)
    # bf16 matmul operands with f32 accumulation -> relaxed tolerance vs f32 ref.
    for got, ref in ((rec, rec_r), (mean, mean_r), (logvar, logvar_r)):
        assert jnp.allclose(got, ref, atol=5e-2, rtol=5e-2), (
            float(jnp.max(jnp.abs(got - ref))))

    print("KERNEL_OK")
</pallas_src>

<mosaic_0001>
module attributes {stable_mosaic.version = 11 : i64} {
  func.func @kernel(%arg0: i32, %arg1: memref<16x32xf32, #tpu.memory_space<vmem>>, %arg2: memref<16x8xf32, #tpu.memory_space<vmem>>, %arg3: memref<32x32xbf16, #tpu.memory_space<vmem>>, %arg4: memref<32x16xbf16, #tpu.memory_space<vmem>>, %arg5: memref<16x8xbf16, #tpu.memory_space<vmem>>, %arg6: memref<8x8xbf16, #tpu.memory_space<vmem>>, %arg7: memref<8x8xbf16, #tpu.memory_space<vmem>>, %arg8: memref<8x8xbf16, #tpu.memory_space<vmem>>, %arg9: memref<8x16xbf16, #tpu.memory_space<vmem>>, %arg10: memref<16x32xbf16, #tpu.memory_space<vmem>>, %arg11: memref<32x32xbf16, #tpu.memory_space<vmem>>, %arg12: memref<9x32xf32, #tpu.memory_space<vmem>>, %arg13: memref<16x32xf32, #tpu.memory_space<vmem>>, %arg14: memref<16x8xf32, #tpu.memory_space<vmem>>, %arg15: memref<16x8xf32, #tpu.memory_space<vmem>>) attributes {dimension_semantics = [#tpu.dimension_semantics<parallel>], iteration_bounds = array<i64: 1>, scalar_prefetch = 0 : i64, scratch_operands = 0 : i64, tpu.core_type = #tpu.core_type<tc>, window_params = [{transform_indices = @transform_0, window_bounds = array<i64: 16, 32>}, {transform_indices = @transform_1, window_bounds = array<i64: 16, 8>}, {pipeline_mode = #tpu.pipeline_mode<synchronous>, transform_indices = @transform_2, window_bounds = array<i64: 32, 32>}, {pipeline_mode = #tpu.pipeline_mode<synchronous>, transform_indices = @transform_3, window_bounds = array<i64: 32, 16>}, {pipeline_mode = #tpu.pipeline_mode<synchronous>, transform_indices = @transform_4, window_bounds = array<i64: 16, 8>}, {pipeline_mode = #tpu.pipeline_mode<synchronous>, transform_indices = @transform_5, window_bounds = array<i64: 8, 8>}, {pipeline_mode = #tpu.pipeline_mode<synchronous>, transform_indices = @transform_6, window_bounds = array<i64: 8, 8>}, {pipeline_mode = #tpu.pipeline_mode<synchronous>, transform_indices = @transform_7, window_bounds = array<i64: 8, 8>}, {pipeline_mode = #tpu.pipeline_mode<synchronous>, transform_indices = @transform_8, window_bounds = array<i64: 8, 16>}, {pipeline_mode = #tpu.pipeline_mode<synchronous>, transform_indices = @transform_9, window_bounds = array<i64: 16, 32>}, {pipeline_mode = #tpu.pipeline_mode<synchronous>, transform_indices = @transform_10, window_bounds = array<i64: 32, 32>}, {pipeline_mode = #tpu.pipeline_mode<synchronous>, transform_indices = @transform_11, window_bounds = array<i64: 9, 32>}, {transform_indices = @transform_12, window_bounds = array<i64: 16, 32>}, {transform_indices = @transform_13, window_bounds = array<i64: 16, 8>}, {transform_indices = @transform_14, window_bounds = array<i64: 16, 8>}]} {
    %c0 = arith.constant 0 : index
    %c0_0 = arith.constant 0 : index
    %0 = vector.load %arg1[%c0, %c0_0] : memref<16x32xf32, #tpu.memory_space<vmem>>, vector<16x32xf32>
    %1 = arith.truncf %0 : vector<16x32xf32> to vector<16x32xbf16>
    %c0_1 = arith.constant 0 : index
    %c0_2 = arith.constant 0 : index
    %2 = vector.load %arg3[%c0_1, %c0_2] : memref<32x32xbf16, #tpu.memory_space<vmem>>, vector<32x32xbf16>
    %cst = arith.constant dense<0.000000e+00> : vector<16x32xf32>
    %3 = tpu.matmul %1, %2, %cst {dimension_numbers = #tpu.dot_dimension_numbers<[1], [0], [0], [1], [0, 0, 1, 1], [], []>} : vector<16x32xbf16>, vector<32x32xbf16>, vector<16x32xf32> -> vector<16x32xf32>
    %c0_3 = arith.constant 0 : index
    %c0_4 = arith.constant 0 : index
    %4 = vector.load %arg12[%c0_3, %c0_4] : memref<9x32xf32, #tpu.memory_space<vmem>>, vector<1x32xf32>
    %5 = vector.broadcast %4 : vector<1x32xf32> to vector<16x32xf32>
    %6 = arith.addf %3, %5 : vector<16x32xf32>
    %cst_5 = arith.constant 0.000000e+00 : f32
    %7 = vector.broadcast %cst_5 : f32 to vector<16x32xf32>
    %8 = arith.maximumf %6, %7 : vector<16x32xf32>
    %9 = arith.truncf %8 : vector<16x32xf32> to vector<16x32xbf16>
    %c0_6 = arith.constant 0 : index
    %c0_7 = arith.constant 0 : index
    %10 = vector.load %arg4[%c0_6, %c0_7] : memref<32x16xbf16, #tpu.memory_space<vmem>>, vector<32x16xbf16>
    %cst_8 = arith.constant dense<0.000000e+00> : vector<16x16xf32>
    %11 = tpu.matmul %9, %10, %cst_8 {dimension_numbers = #tpu.dot_dimension_numbers<[1], [0], [0], [1], [0, 0, 1, 1], [], []>} : vector<16x32xbf16>, vector<32x16xbf16>, vector<16x16xf32> -> vector<16x16xf32>
    %c1 = arith.constant 1 : index
    %c0_9 = arith.constant 0 : index
    %12 = vector.load %arg12[%c1, %c0_9] : memref<9x32xf32, #tpu.memory_space<vmem>>, vector<1x16xf32>
    %13 = vector.broadcast %12 : vector<1x16xf32> to vector<16x16xf32>
    %14 = arith.addf %11, %13 : vector<16x16xf32>
    %cst_10 = arith.constant 0.000000e+00 : f32
    %15 = vector.broadcast %cst_10 : f32 to vector<16x16xf32>
    %16 = arith.maximumf %14, %15 : vector<16x16xf32>
    %17 = arith.truncf %16 : vector<16x16xf32> to vector<16x16xbf16>
    %c0_11 = arith.constant 0 : index
    %c0_12 = arith.constant 0 : index
    %18 = vector.load %arg5[%c0_11, %c0_12] : memref<16x8xbf16, #tpu.memory_space<vmem>>, vector<16x8xbf16>
    %cst_13 = arith.constant dense<0.000000e+00> : vector<16x8xf32>
    %19 = tpu.matmul %17, %18, %cst_13 {dimension_numbers = #tpu.dot_dimension_numbers<[1], [0], [0], [1], [0, 0, 1, 1], [], []>} : vector<16x16xbf16>, vector<16x8xbf16>, vector<16x8xf32> -> vector<16x8xf32>
    %c2 = arith.constant 2 : index
    %c0_14 = arith.constant 0 : index
    %20 = vector.load %arg12[%c2, %c0_14] : memref<9x32xf32, #tpu.memory_space<vmem>>, vector<1x8xf32>
    %21 = vector.broadcast %20 : vector<1x8xf32> to vector<16x8xf32>
    %22 = arith.addf %19, %21 : vector<16x8xf32>
    %cst_15 = arith.constant 0.000000e+00 : f32
    %23 = vector.broadcast %cst_15 : f32 to vector<16x8xf32>
    %24 = arith.maximumf %22, %23 : vector<16x8xf32>
    %25 = arith.truncf %24 : vector<16x8xf32> to vector<16x8xbf16>
    %c0_16 = arith.constant 0 : index
    %c0_17 = arith.constant 0 : index
    %26 = vector.load %arg6[%c0_16, %c0_17] : memref<8x8xbf16, #tpu.memory_space<vmem>>, vector<8x8xbf16>
    %cst_18 = arith.constant dense<0.000000e+00> : vector<16x8xf32>
    %27 = tpu.matmul %25, %26, %cst_18 {dimension_numbers = #tpu.dot_dimension_numbers<[1], [0], [0], [1], [0, 0, 1, 1], [], []>} : vector<16x8xbf16>, vector<8x8xbf16>, vector<16x8xf32> -> vector<16x8xf32>
    %c3 = arith.constant 3 : index
    %c0_19 = arith.constant 0 : index
    %28 = vector.load %arg12[%c3, %c0_19] : memref<9x32xf32, #tpu.memory_space<vmem>>, vector<1x8xf32>
    %29 = vector.broadcast %28 : vector<1x8xf32> to vector<16x8xf32>
    %30 = arith.addf %27, %29 : vector<16x8xf32>
    %31 = arith.truncf %24 : vector<16x8xf32> to vector<16x8xbf16>
    %c0_20 = arith.constant 0 : index
    %c0_21 = arith.constant 0 : index
    %32 = vector.load %arg7[%c0_20, %c0_21] : memref<8x8xbf16, #tpu.memory_space<vmem>>, vector<8x8xbf16>
    %cst_22 = arith.constant dense<0.000000e+00> : vector<16x8xf32>
    %33 = tpu.matmul %31, %32, %cst_22 {dimension_numbers = #tpu.dot_dimension_numbers<[1], [0], [0], [1], [0, 0, 1, 1], [], []>} : vector<16x8xbf16>, vector<8x8xbf16>, vector<16x8xf32> -> vector<16x8xf32>
    %c4 = arith.constant 4 : index
    %c0_23 = arith.constant 0 : index
    %34 = vector.load %arg12[%c4, %c0_23] : memref<9x32xf32, #tpu.memory_space<vmem>>, vector<1x8xf32>
    %35 = vector.broadcast %34 : vector<1x8xf32> to vector<16x8xf32>
    %36 = arith.addf %33, %35 : vector<16x8xf32>
    %c0_24 = arith.constant 0 : index
    %c0_25 = arith.constant 0 : index
    %37 = vector.load %arg2[%c0_24, %c0_25] : memref<16x8xf32, #tpu.memory_space<vmem>>, vector<16x8xf32>
    %cst_26 = arith.constant 5.000000e-01 : f32
    %38 = vector.broadcast %cst_26 : f32 to vector<16x8xf32>
    %39 = arith.mulf %38, %36 : vector<16x8xf32>
    %40 = math.exp %39 : vector<16x8xf32>
    %41 = arith.mulf %37, %40 : vector<16x8xf32>
    %42 = arith.addf %41, %30 : vector<16x8xf32>
    %43 = arith.truncf %42 : vector<16x8xf32> to vector<16x8xbf16>
    %c0_27 = arith.constant 0 : index
    %c0_28 = arith.constant 0 : index
    %44 = vector.load %arg8[%c0_27, %c0_28] : memref<8x8xbf16, #tpu.memory_space<vmem>>, vector<8x8xbf16>
    %cst_29 = arith.constant dense<0.000000e+00> : vector<16x8xf32>
    %45 = tpu.matmul %43, %44, %cst_29 {dimension_numbers = #tpu.dot_dimension_numbers<[1], [0], [0], [1], [0, 0, 1, 1], [], []>} : vector<16x8xbf16>, vector<8x8xbf16>, vector<16x8xf32> -> vector<16x8xf32>
    %c5 = arith.constant 5 : index
    %c0_30 = arith.constant 0 : index
    %46 = vector.load %arg12[%c5, %c0_30] : memref<9x32xf32, #tpu.memory_space<vmem>>, vector<1x8xf32>
    %47 = vector.broadcast %46 : vector<1x8xf32> to vector<16x8xf32>
    %48 = arith.addf %45, %47 : vector<16x8xf32>
    %cst_31 = arith.constant 0.000000e+00 : f32
    %49 = vector.broadcast %cst_31 : f32 to vector<16x8xf32>
    %50 = arith.maximumf %48, %49 : vector<16x8xf32>
    %51 = arith.truncf %50 : vector<16x8xf32> to vector<16x8xbf16>
    %c0_32 = arith.constant 0 : index
    %c0_33 = arith.constant 0 : index
    %52 = vector.load %arg9[%c0_32, %c0_33] : memref<8x16xbf16, #tpu.memory_space<vmem>>, vector<8x16xbf16>
    %cst_34 = arith.constant dense<0.000000e+00> : vector<16x16xf32>
    %53 = tpu.matmul %51, %52, %cst_34 {dimension_numbers = #tpu.dot_dimension_numbers<[1], [0], [0], [1], [0, 0, 1, 1], [], []>} : vector<16x8xbf16>, vector<8x16xbf16>, vector<16x16xf32> -> vector<16x16xf32>
    %c6 = arith.constant 6 : index
    %c0_35 = arith.constant 0 : index
    %54 = vector.load %arg12[%c6, %c0_35] : memref<9x32xf32, #tpu.memory_space<vmem>>, vector<1x16xf32>
    %55 = vector.broadcast %54 : vector<1x16xf32> to vector<16x16xf32>
    %56 = arith.addf %53, %55 : vector<16x16xf32>
    %cst_36 = arith.constant 0.000000e+00 : f32
    %57 = vector.broadcast %cst_36 : f32 to vector<16x16xf32>
    %58 = arith.maximumf %56, %57 : vector<16x16xf32>
    %59 = arith.truncf %58 : vector<16x16xf32> to vector<16x16xbf16>
    %c0_37 = arith.constant 0 : index
    %c0_38 = arith.constant 0 : index
    %60 = vector.load %arg10[%c0_37, %c0_38] : memref<16x32xbf16, #tpu.memory_space<vmem>>, vector<16x32xbf16>
    %cst_39 = arith.constant dense<0.000000e+00> : vector<16x32xf32>
    %61 = tpu.matmul %59, %60, %cst_39 {dimension_numbers = #tpu.dot_dimension_numbers<[1], [0], [0], [1], [0, 0, 1, 1], [], []>} : vector<16x16xbf16>, vector<16x32xbf16>, vector<16x32xf32> -> vector<16x32xf32>
    %c7 = arith.constant 7 : index
    %c0_40 = arith.constant 0 : index
    %62 = vector.load %arg12[%c7, %c0_40] : memref<9x32xf32, #tpu.memory_space<vmem>>, vector<1x32xf32>
    %63 = vector.broadcast %62 : vector<1x32xf32> to vector<16x32xf32>
    %64 = arith.addf %61, %63 : vector<16x32xf32>
    %cst_41 = arith.constant 0.000000e+00 : f32
    %65 = vector.broadcast %cst_41 : f32 to vector<16x32xf32>
    %66 = arith.maximumf %64, %65 : vector<16x32xf32>
    %67 = arith.truncf %66 : vector<16x32xf32> to vector<16x32xbf16>
    %c0_42 = arith.constant 0 : index
    %c0_43 = arith.constant 0 : index
    %68 = vector.load %arg11[%c0_42, %c0_43] : memref<32x32xbf16, #tpu.memory_space<vmem>>, vector<32x32xbf16>
    %cst_44 = arith.constant dense<0.000000e+00> : vector<16x32xf32>
    %69 = tpu.matmul %67, %68, %cst_44 {dimension_numbers = #tpu.dot_dimension_numbers<[1], [0], [0], [1], [0, 0, 1, 1], [], []>} : vector<16x32xbf16>, vector<32x32xbf16>, vector<16x32xf32> -> vector<16x32xf32>
    %c8 = arith.constant 8 : index
    %c0_45 = arith.constant 0 : index
    %70 = vector.load %arg12[%c8, %c0_45] : memref<9x32xf32, #tpu.memory_space<vmem>>, vector<1x32xf32>
    %71 = vector.broadcast %70 : vector<1x32xf32> to vector<16x32xf32>
    %72 = arith.addf %69, %71 : vector<16x32xf32>
    %c0_46 = arith.constant 0 : index
    %c0_47 = arith.constant 0 : index
    %73 = vector.load %arg13[%c0_46, %c0_47] : memref<16x32xf32, #tpu.memory_space<vmem>>, vector<16x32xf32>
    tpu.vector_store %arg13[%c0_46, %c0_47], %72 {strides = array<i32>} : memref<16x32xf32, #tpu.memory_space<vmem>>, vector<16x32xf32>,
    %c0_48 = arith.constant 0 : index
    %c0_49 = arith.constant 0 : index
    %74 = vector.load %arg14[%c0_48, %c0_49] : memref<16x8xf32, #tpu.memory_space<vmem>>, vector<16x8xf32>
    tpu.vector_store %arg14[%c0_48, %c0_49], %30 {strides = array<i32>} : memref<16x8xf32, #tpu.memory_space<vmem>>, vector<16x8xf32>,
    %c0_50 = arith.constant 0 : index
    %c0_51 = arith.constant 0 : index
    %75 = vector.load %arg15[%c0_50, %c0_51] : memref<16x8xf32, #tpu.memory_space<vmem>>, vector<16x8xf32>
    tpu.vector_store %arg15[%c0_50, %c0_51], %36 {strides = array<i32>} : memref<16x8xf32, #tpu.memory_space<vmem>>, vector<16x8xf32>,
    return
  }
  func.func @transform_0(%arg0: i32) -> (i32, i32) {
    %c0_i32 = arith.constant 0 : i32
    %c0_i32_0 = arith.constant 0 : i32
    return %arg0, %c0_i32 : i32, i32
  }
  func.func @transform_1(%arg0: i32) -> (i32, i32) {
    %c0_i32 = arith.constant 0 : i32
    %c0_i32_0 = arith.constant 0 : i32
    return %arg0, %c0_i32 : i32, i32
  }
  func.func @transform_2(%arg0: i32) -> (i32, i32) {
    %c0_i32 = arith.constant 0 : i32
    %c0_i32_0 = arith.constant 0 : i32
    %c0_i32_1 = arith.constant 0 : i32
    return %c0_i32, %c0_i32_0 : i32, i32
  }
  func.func @transform_3(%arg0: i32) -> (i32, i32) {
    %c0_i32 = arith.constant 0 : i32
    %c0_i32_0 = arith.constant 0 : i32
    %c0_i32_1 = arith.constant 0 : i32
    return %c0_i32, %c0_i32_0 : i32, i32
  }
  func.func @transform_4(%arg0: i32) -> (i32, i32) {
    %c0_i32 = arith.constant 0 : i32
    %c0_i32_0 = arith.constant 0 : i32
    %c0_i32_1 = arith.constant 0 : i32
    return %c0_i32, %c0_i32_0 : i32, i32
  }
  func.func @transform_5(%arg0: i32) -> (i32, i32) {
    %c0_i32 = arith.constant 0 : i32
    %c0_i32_0 = arith.constant 0 : i32
    %c0_i32_1 = arith.constant 0 : i32
    return %c0_i32, %c0_i32_0 : i32, i32
  }
  func.func @transform_6(%arg0: i32) -> (i32, i32) {
    %c0_i32 = arith.constant 0 : i32
    %c0_i32_0 = arith.constant 0 : i32
    %c0_i32_1 = arith.constant 0 : i32
    return %c0_i32, %c0_i32_0 : i32, i32
  }
  func.func @transform_7(%arg0: i32) -> (i32, i32) {
    %c0_i32 = arith.constant 0 : i32
    %c0_i32_0 = arith.constant 0 : i32
    %c0_i32_1 = arith.constant 0 : i32
    return %c0_i32, %c0_i32_0 : i32, i32
  }
  func.func @transform_8(%arg0: i32) -> (i32, i32) {
    %c0_i32 = arith.constant 0 : i32
    %c0_i32_0 = arith.constant 0 : i32
    %c0_i32_1 = arith.constant 0 : i32
    return %c0_i32, %c0_i32_0 : i32, i32
  }
  func.func @transform_9(%arg0: i32) -> (i32, i32) {
    %c0_i32 = arith.constant 0 : i32
    %c0_i32_0 = arith.constant 0 : i32
    %c0_i32_1 = arith.constant 0 : i32
    return %c0_i32, %c0_i32_0 : i32, i32
  }
  func.func @transform_10(%arg0: i32) -> (i32, i32) {
    %c0_i32 = arith.constant 0 : i32
    %c0_i32_0 = arith.constant 0 : i32
    %c0_i32_1 = arith.constant 0 : i32
    return %c0_i32, %c0_i32_0 : i32, i32
  }
  func.func @transform_11(%arg0: i32) -> (i32, i32) {
    %c0_i32 = arith.constant 0 : i32
    %c0_i32_0 = arith.constant 0 : i32
    %c0_i32_1 = arith.constant 0 : i32
    return %c0_i32, %c0_i32_0 : i32, i32
  }
  func.func @transform_12(%arg0: i32) -> (i32, i32) {
    %c0_i32 = arith.constant 0 : i32
    %c0_i32_0 = arith.constant 0 : i32
    return %arg0, %c0_i32 : i32, i32
  }
  func.func @transform_13(%arg0: i32) -> (i32, i32) {
    %c0_i32 = arith.constant 0 : i32
    %c0_i32_0 = arith.constant 0 : i32
    return %arg0, %c0_i32 : i32, i32
  }
  func.func @transform_14(%arg0: i32) -> (i32, i32) {
    %c0_i32 = arith.constant 0 : i32
    %c0_i32_0 = arith.constant 0 : i32
    return %arg0, %c0_i32 : i32, i32
  }
}

</mosaic_0001>

<llo_original>
// kernel: tpu_custom_call.1
$region0: #{tpu_custom_call.1}
  #allocation0 [shape = 'u32[]', space=smem, size = 0x4, offset = 0x4, fixed_abs, tag = 'smem constant byte address 0x4 - core index']
  #allocation1 [shape = 'u32[144,128]{1,0:T(1,128)}', space=vmem, size = 0x12000, scoped, tag = 'internal scratch']
  %s0 = inlined_call_operand.vmem [shape: f32[16,32], index: 0, kind: input, shape index: {}]
  %s1 = inlined_call_operand.vmem [shape: f32[16,8], index: 1, kind: input, shape index: {}]
  %s2 = inlined_call_operand.vmem [shape: bf16[32,32], index: 2, kind: input, shape index: {}]
  %s3 = inlined_call_operand.vmem [shape: bf16[32,16], index: 3, kind: input, shape index: {}]
  %s4 = inlined_call_operand.vmem [shape: bf16[16,8], index: 4, kind: input, shape index: {}]
  %s5 = inlined_call_operand.vmem [shape: bf16[8,8], index: 5, kind: input, shape index: {}]
  %s6 = inlined_call_operand.vmem [shape: bf16[8,8], index: 6, kind: input, shape index: {}]
  %s7 = inlined_call_operand.vmem [shape: bf16[8,8], index: 7, kind: input, shape index: {}]
  %s8 = inlined_call_operand.vmem [shape: bf16[8,16], index: 8, kind: input, shape index: {}]
  %s9 = inlined_call_operand.vmem [shape: bf16[16,32], index: 9, kind: input, shape index: {}]
  %s10 = inlined_call_operand.vmem [shape: bf16[32,32], index: 10, kind: input, shape index: {}]
  %s11 = inlined_call_operand.vmem [shape: f32[9,32], index: 11, kind: input, shape index: {}]
  %s12 = inlined_call_operand.hbm [shape: f32[16,32], index: 12, kind: output, shape index: {0}]
  %s13 = inlined_call_operand.vmem [shape: f32[16,8], index: 13, kind: output, shape index: {1}]
  %s14 = inlined_call_operand.vmem [shape: f32[16,8], index: 14, kind: output, shape index: {2}]
  %15 = xla_tuple %s12, %s13, %s14
  %s16 = sld [smem:[#allocation0]]
  $region74: #{tpu_custom_call.1} parent=0
    _
  %s18 = ssub.s32 1, %s16
  %s19 = scalar_select 0, %s18, %s16
  $region1: #{tpu_custom_call.1} parent=0
    #allocation2 [shape = 'u8[8192]{0}', space=vmem, size = 0x2000, scoped, tag = 'output window, operand 0, single buffered']
    #allocation3 [shape = 's32[1]{0}', space=sflag, size = 0x4, scoped, tag = 'scoped memory for tpu_custom_call.1']
    %20 = vsyncpa [#allocation3], 0
    // Predicated region
    $region2: #{tpu_custom_call.1} parent=1 // pred_check
      _
    $region3: #{tpu_custom_call.1} parent=1 // pred_check_branch
      %22 = sbr.rel (0) target = $region5
    $region4: #{tpu_custom_call.1} parent=1 // pred_region
      _
    $region5: #{tpu_custom_call.1} parent=1 // pred_fallthru
      _
    // Predicated region
    $region6: #{tpu_custom_call.1} parent=1 // pred_check
      _
    $region7: #{tpu_custom_call.1} parent=1 // pred_check_branch
      %24 = sbr.rel (0) target = $region9
    $region8: #{tpu_custom_call.1} parent=1 // pred_region
      _
    $region9: #{tpu_custom_call.1} parent=1 // pred_fallthru
      _
    // Predicated region
    $region10: #{tpu_custom_call.1} parent=1 // pred_check
      _
    $region11: #{tpu_custom_call.1} parent=1 // pred_check_branch
      %26 = sbr.rel (0) target = $region13
    $region12: #{tpu_custom_call.1} parent=1 // pred_region
      _
    $region13: #{tpu_custom_call.1} parent=1 // pred_fallthru
      _
    // Predicated region
    $region14: #{tpu_custom_call.1} parent=1 // pred_check
      _
    $region15: #{tpu_custom_call.1} parent=1 // pred_check_branch
      %28 = sbr.rel (0) target = $region17
    $region16: #{tpu_custom_call.1} parent=1 // pred_region
      _
    $region17: #{tpu_custom_call.1} parent=1 // pred_fallthru
      _
    // Predicated region
    $region18: #{tpu_custom_call.1} parent=1 // pred_check
      _
    $region19: #{tpu_custom_call.1} parent=1 // pred_check_branch
      %30 = sbr.rel (0) target = $region21
    $region20: #{tpu_custom_call.1} parent=1 // pred_region
      _
    $region21: #{tpu_custom_call.1} parent=1 // pred_fallthru
      _
    // Predicated region
    $region22: #{tpu_custom_call.1} parent=1 // pred_check
      _
    $region23: #{tpu_custom_call.1} parent=1 // pred_check_branch
      %32 = sbr.rel (0) target = $region25
    $region24: #{tpu_custom_call.1} parent=1 // pred_region
      _
    $region25: #{tpu_custom_call.1} parent=1 // pred_fallthru
      _
    // Predicated region
    $region26: #{tpu_custom_call.1} parent=1 // pred_check
      _
    $region27: #{tpu_custom_call.1} parent=1 // pred_check_branch
      %34 = sbr.rel (0) target = $region29
    $region28: #{tpu_custom_call.1} parent=1 // pred_region
      _
    $region29: #{tpu_custom_call.1} parent=1 // pred_fallthru
      _
    // Predicated region
    $region30: #{tpu_custom_call.1} parent=1 // pred_check
      _
    $region31: #{tpu_custom_call.1} parent=1 // pred_check_branch
      %36 = sbr.rel (0) target = $region33
    $region32: #{tpu_custom_call.1} parent=1 // pred_region
      _
    $region33: #{tpu_custom_call.1} parent=1 // pred_fallthru
      _
    // Predicated region
    $region34: #{tpu_custom_call.1} parent=1 // pred_check
      _
    $region35: #{tpu_custom_call.1} parent=1 // pred_check_branch
      %38 = sbr.rel (0) target = $region37
    $region36: #{tpu_custom_call.1} parent=1 // pred_region
      _
    $region37: #{tpu_custom_call.1} parent=1 // pred_fallthru
      _
    // Predicated region
    $region38: #{tpu_custom_call.1} parent=1 // pred_check
      _
    $region39: #{tpu_custom_call.1} parent=1 // pred_check_branch
      %40 = sbr.rel (0) target = $region41
    $region40: #{tpu_custom_call.1} parent=1 // pred_region
      _
    $region41: #{tpu_custom_call.1} parent=1 // pred_fallthru
      _
    // Predicated region
    $region42: #{tpu_custom_call.1} parent=1 // pred_check
      _
    $region43: #{tpu_custom_call.1} parent=1 // pred_check_branch
      %42 = sbr.rel (0) target = $region45
    $region44: #{tpu_custom_call.1} parent=1 // pred_region
      _
    $region45: #{tpu_custom_call.1} parent=1 // pred_fallthru
      _
    // Predicated region
    $region46: #{tpu_custom_call.1} parent=1 // pred_check
      _
    $region47: #{tpu_custom_call.1} parent=1 // pred_check_branch
      %44 = sbr.rel (0) target = $region49
    $region48: #{tpu_custom_call.1} parent=1 // pred_region
      _
    $region49: #{tpu_custom_call.1} parent=1 // pred_fallthru
      _
    %v46 = vld [vmem:[%s0] sm:$0xff]
    %v47 = vld [vmem:[%s0 + $0x8] sm:$0xff]
    %v48 = vpack.c.bf16 %v47, %v46
    %v49 = vld [vmem:[%s2] sm:$0xf]
    %v50 = vld [vmem:[%s2 + $0x4] sm:$0xf]
    %v51 = vld [vmem:[%s2 + $0x8] sm:$0xf]
    %v52 = vld [vmem:[%s2 + $0xc] sm:$0xf]
    %v53 = vld [vmem:[%s11] sm:$0x1]
    %v54 = vlaneseq
    %v55 = vshrl.u32 %v54, 7
    %v56 = vsub.s32 0, %v55
    %v57 = vrot.slane %v53, %v56
    %v62 = vunpack.c.l.b16 %v49
    %v63 = vunpack.c.l.b16 %v50
    %v64 = vunpack.c.l.b16 %v51
    %v65 = vunpack.c.l.b16 %v52
    %v66 = vpack.c.b16 %v63, %v62
    %v67 = vpack.c.b16 %v65, %v64
    %vm70 = vcmask 261120
    %v72 = vsel %vm70, %v48, 0
    %74 = vmatprep.subr.bf16.mxu0 0
    %75 = vmatpush1.bf16.msra.mxu0 %v66
    %76 = vmatprep.subr.bf16.mxu0 0
    %77 = vmatpush1.bf16.msra.mxu0 %v67
    %78 = vmatprep.subr.bf16.mxu0 0
    %79 = vmatpush1.bf16.msra.mxu0 0
    %80 = vmatprep.subr.bf16.mxu0 0
    %81 = vmatpush1.bf16.msra.mxu0 0
    %82 = vmatprep.subr.bf16.mxu0 0
    %83 = vmatpush1.bf16.msra.mxu0 0
    %84 = vmatprep.subr.bf16.mxu0 0
    %85 = vmatpush1.bf16.msra.mxu0 0
    %86 = vmatprep.subr.bf16.mxu0 0
    %87 = vmatpush1.bf16.msra.mxu0 0
    %88 = vmatprep.subr.bf16.mxu0 0
    %89 = vmatpush1.bf16.msra.mxu0 0
    %90 = vmatprep.subr.bf16.mxu0 0
    %91 = vmatpush1.bf16.msra.mxu0 0
    %92 = vmatprep.subr.bf16.mxu0 0
    %93 = vmatpush1.bf16.msra.mxu0 0
    %94 = vmatprep.subr.bf16.mxu0 0
    %95 = vmatpush1.bf16.msra.mxu0 0
    %96 = vmatprep.subr.bf16.mxu0 0
    %97 = vmatpush1.bf16.msra.mxu0 0
    %98 = vmatprep.subr.bf16.mxu0 0
    %99 = vmatpush1.bf16.msra.mxu0 0
    %100 = vmatprep.subr.bf16.mxu0 0
    %101 = vmatpush1.bf16.msra.mxu0 0
    %102 = vmatprep.subr.bf16.mxu0 0
    %103 = vmatpush1.bf16.msra.mxu0 0
    %104 = vmatprep.subr.bf16.mxu0 0
    %105 = vmatpush1.bf16.msra.mxu0 0
    %106 = vmatprep.mubr.bf16.mxu0 0
    %107 = vmatmul.mubr.bf16.gmra.mrb[0].mxu0 %v72
    %v108 = vpop.f32.mrb[0].mxu0
    %v109 = vadd.f32 %v57, %v108
    %v110 = vpop.f32.mrb[0].mxu0
    %v111 = vpop.f32.mrb[0].mxu0
    %v112 = vadd.f32 %v57, %v111
    %v113 = vpop.f32.mrb[0].mxu0
    %114 = vdwg.mxu0
    %v115 = vmax.f32 %v109, 0.0
    %v116 = vmax.f32 %v112, 0.0
    %v117 = vpack.c.bf16 %v116, %v115
    %v118 = vld [vmem:[%s3] sm:$0xf]
    %v119 = vld [vmem:[%s3 + $0x4] sm:$0xf]
    %v120 = vld [vmem:[%s3 + $0x8] sm:$0xf]
    %v121 = vld [vmem:[%s3 + $0xc] sm:$0xf]
    %v122 = vld [vmem:[%s11 + $0x1] sm:$0x1]
    %v123 = vlaneseq
    %v124 = vshrl.u32 %v123, 7
    %v125 = vsub.s32 0, %v124
    %v126 = vrot.slane %v122, %v125
    %v131 = vunpack.c.l.b16 %v118
    %v132 = vunpack.c.l.b16 %v119
    %v133 = vunpack.c.l.b16 %v120
    %v134 = vunpack.c.l.b16 %v121
    %v135 = vpack.c.b16 %v132, %v131
    %v136 = vpack.c.b16 %v134, %v133
    %v140 = vsel %vm70, %v117, 0
    %142 = vmatprep.subr.bf16.mxu0 0
    %143 = vmatpush1.bf16.msra.mxu0 %v135
    %144 = vmatprep.subr.bf16.mxu0 0
    %145 = vmatpush1.bf16.msra.mxu0 %v136
    %146 = vmatprep.subr.bf16.mxu0 0
    %147 = vmatpush1.bf16.msra.mxu0 0
    %148 = vmatprep.subr.bf16.mxu0 0
    %149 = vmatpush1.bf16.msra.mxu0 0
    %150 = vmatprep.subr.bf16.mxu0 0
    %151 = vmatpush1.bf16.msra.mxu0 0
    %152 = vmatprep.subr.bf16.mxu0 0
    %153 = vmatpush1.bf16.msra.mxu0 0
    %154 = vmatprep.subr.bf16.mxu0 0
    %155 = vmatpush1.bf16.msra.mxu0 0
    %156 = vmatprep.subr.bf16.mxu0 0
    %157 = vmatpush1.bf16.msra.mxu0 0
    %158 = vmatprep.subr.bf16.mxu0 0
    %159 = vmatpush1.bf16.msra.mxu0 0
    %160 = vmatprep.subr.bf16.mxu0 0
    %161 = vmatpush1.bf16.msra.mxu0 0
    %162 = vmatprep.subr.bf16.mxu0 0
    %163 = vmatpush1.bf16.msra.mxu0 0
    %164 = vmatprep.subr.bf16.mxu0 0
    %165 = vmatpush1.bf16.msra.mxu0 0
    %166 = vmatprep.subr.bf16.mxu0 0
    %167 = vmatpush1.bf16.msra.mxu0 0
    %168 = vmatprep.subr.bf16.mxu0 0
    %169 = vmatpush1.bf16.msra.mxu0 0
    %170 = vmatprep.subr.bf16.mxu0 0
    %171 = vmatpush1.bf16.msra.mxu0 0
    %172 = vmatprep.subr.bf16.mxu0 0
    %173 = vmatpush1.bf16.msra.mxu0 0
    %174 = vmatprep.mubr.bf16.mxu0 0
    %175 = vmatmul.mubr.bf16.gmra.mrb[0].mxu0 %v140
    %v176 = vpop.f32.mrb[0].mxu0
    %v177 = vadd.f32 %v126, %v176
    %v178 = vpop.f32.mrb[0].mxu0
    %v179 = vpop.f32.mrb[0].mxu0
    %v180 = vadd.f32 %v126, %v179
    %v181 = vpop.f32.mrb[0].mxu0
    %182 = vdwg.mxu0
    %v183 = vmax.f32 %v177, 0.0
    %v184 = vmax.f32 %v180, 0.0
    %v185 = vpack.c.bf16 %v184, %v183
    %v186 = vld [vmem:[%s4] sm:$0xf]
    %v187 = vld [vmem:[%s4 + $0x4] sm:$0xf]
    %v188 = vld [vmem:[%s11 + $0x2] sm:$0x1]
    %v189 = vlaneseq
    %v190 = vshrl.u32 %v189, 7
    %v191 = vsub.s32 0, %v190
    %v192 = vrot.slane %v188, %v191
    %v195 = vunpack.c.l.b16 %v186
    %v196 = vunpack.c.l.b16 %v187
    %v197 = vpack.c.b16 %v196, %v195
    %vm199 = vcmask 130048
    %v201 = vsel %vm199, %v185, 0
    %203 = vmatprep.subr.bf16.mxu0 0
    %204 = vmatpush1.bf16.msra.mxu0 %v197
    %205 = vmatprep.subr.bf16.mxu0 0
    %206 = vmatpush1.bf16.msra.mxu0 0
    %207 = vmatprep.subr.bf16.mxu0 0
    %208 = vmatpush1.bf16.msra.mxu0 0
    %209 = vmatprep.subr.bf16.mxu0 0
    %210 = vmatpush1.bf16.msra.mxu0 0
    %211 = vmatprep.subr.bf16.mxu0 0
    %212 = vmatpush1.bf16.msra.mxu0 0
    %213 = vmatprep.subr.bf16.mxu0 0
    %214 = vmatpush1.bf16.msra.mxu0 0
    %215 = vmatprep.subr.bf16.mxu0 0
    %216 = vmatpush1.bf16.msra.mxu0 0
    %217 = vmatprep.subr.bf16.mxu0 0
    %218 = vmatpush1.bf16.msra.mxu0 0
    %219 = vmatprep.subr.bf16.mxu0 0
    %220 = vmatpush1.bf16.msra.mxu0 0
    %221 = vmatprep.subr.bf16.mxu0 0
    %222 = vmatpush1.bf16.msra.mxu0 0
    %223 = vmatprep.subr.bf16.mxu0 0
    %224 = vmatpush1.bf16.msra.mxu0 0
    %225 = vmatprep.subr.bf16.mxu0 0
    %226 = vmatpush1.bf16.msra.mxu0 0
    %227 = vmatprep.subr.bf16.mxu0 0
    %228 = vmatpush1.bf16.msra.mxu0 0
    %229 = vmatprep.subr.bf16.mxu0 0
    %230 = vmatpush1.bf16.msra.mxu0 0
    %231 = vmatprep.subr.bf16.mxu0 0
    %232 = vmatpush1.bf16.msra.mxu0 0
    %233 = vmatprep.subr.bf16.mxu0 0
    %234 = vmatpush1.bf16.msra.mxu0 0
    %235 = vmatprep.mubr.bf16.mxu0 0
    %236 = vmatmul.mubr.bf16.gmra.mrb[0].mxu0 %v201
    %v237 = vpop.f32.mrb[0].mxu0
    %v238 = vadd.f32 %v192, %v237
    %v239 = vpop.f32.mrb[0].mxu0
    %v240 = vpop.f32.mrb[0].mxu0
    %v241 = vadd.f32 %v192, %v240
    %v242 = vpop.f32.mrb[0].mxu0
    %243 = vdwg.mxu0
    %v244 = vmax.f32 %v238, 0.0
    %v245 = vmax.f32 %v241, 0.0
    %v246 = vpack.c.bf16 %v245, %v244
    %v247 = vld [vmem:[%s5] sm:$0xf]
    %v248 = vld [vmem:[%s11 + $0x3] sm:$0x1]
    %v249 = vlaneseq
    %v250 = vshrl.u32 %v249, 7
    %v251 = vsub.s32 0, %v250
    %v252 = vrot.slane %v248, %v251
    %vm253 = vcmask 64512
    %v255 = vsel %vm253, %v246, 0
    %vm257 = vcmask 1043456
    %v259 = vsel %vm257, %v247, 0
    %261 = vmatprep.subr.bf16.mxu0 0
    %262 = vmatpush1.bf16.msra.mxu0 %v259
    %263 = vmatprep.subr.bf16.mxu0 0
    %264 = vmatpush1.bf16.msra.mxu0 0
    %265 = vmatprep.subr.bf16.mxu0 0
    %266 = vmatpush1.bf16.msra.mxu0 0
    %267 = vmatprep.subr.bf16.mxu0 0
    %268 = vmatpush1.bf16.msra.mxu0 0
    %269 = vmatprep.subr.bf16.mxu0 0
    %270 = vmatpush1.bf16.msra.mxu0 0
    %271 = vmatprep.subr.bf16.mxu0 0
    %272 = vmatpush1.bf16.msra.mxu0 0
    %273 = vmatprep.subr.bf16.mxu0 0
    %274 = vmatpush1.bf16.msra.mxu0 0
    %275 = vmatprep.subr.bf16.mxu0 0
    %276 = vmatpush1.bf16.msra.mxu0 0
    %277 = vmatprep.subr.bf16.mxu0 0
    %278 = vmatpush1.bf16.msra.mxu0 0
    %279 = vmatprep.subr.bf16.mxu0 0
    %280 = vmatpush1.bf16.msra.mxu0 0
    %281 = vmatprep.subr.bf16.mxu0 0
    %282 = vmatpush1.bf16.msra.mxu0 0
    %283 = vmatprep.subr.bf16.mxu0 0
    %284 = vmatpush1.bf16.msra.mxu0 0
    %285 = vmatprep.subr.bf16.mxu0 0
    %286 = vmatpush1.bf16.msra.mxu0 0
    %287 = vmatprep.subr.bf16.mxu0 0
    %288 = vmatpush1.bf16.msra.mxu0 0
    %289 = vmatprep.subr.bf16.mxu0 0
    %290 = vmatpush1.bf16.msra.mxu0 0
    %291 = vmatprep.subr.bf16.mxu0 0
    %292 = vmatpush1.bf16.msra.mxu0 0
    %293 = vmatprep.mubr.bf16.mxu0 0
    %294 = vmatmul.mubr.bf16.gmra.mrb[0].mxu0 %v255
    %v295 = vpop.f32.mrb[0].mxu0
    %v296 = vadd.f32 %v252, %v295
    %v297 = vpop.f32.mrb[0].mxu0
    %v298 = vpop.f32.mrb[0].mxu0
    %v299 = vadd.f32 %v252, %v298
    %v300 = vpop.f32.mrb[0].mxu0
    %301 = vdwg.mxu0
    %v302 = vld [vmem:[%s6] sm:$0xf]
    %v303 = vld [vmem:[%s11 + $0x4] sm:$0x1]
    %v304 = vlaneseq
    %v305 = vshrl.u32 %v304, 7
    %v306 = vsub.s32 0, %v305
    %v307 = vrot.slane %v303, %v306
    %v309 = vsel %vm257, %v302, 0
    %311 = vmatprep.subr.bf16.mxu0 0
    %312 = vmatpush1.bf16.msra.mxu0 %v309
    %313 = vmatprep.subr.bf16.mxu0 0
    %314 = vmatpush1.bf16.msra.mxu0 0
    %315 = vmatprep.subr.bf16.mxu0 0
    %316 = vmatpush1.bf16.msra.mxu0 0
    %317 = vmatprep.subr.bf16.mxu0 0
    %318 = vmatpush1.bf16.msra.mxu0 0
    %319 = vmatprep.subr.bf16.mxu0 0
    %320 = vmatpush1.bf16.msra.mxu0 0
    %321 = vmatprep.subr.bf16.mxu0 0
    %322 = vmatpush1.bf16.msra.mxu0 0
    %323 = vmatprep.subr.bf16.mxu0 0
    %324 = vmatpush1.bf16.msra.mxu0 0
    %325 = vmatprep.subr.bf16.mxu0 0
    %326 = vmatpush1.bf16.msra.mxu0 0
    %327 = vmatprep.subr.bf16.mxu0 0
    %328 = vmatpush1.bf16.msra.mxu0 0
    %329 = vmatprep.subr.bf16.mxu0 0
    %330 = vmatpush1.bf16.msra.mxu0 0
    %331 = vmatprep.subr.bf16.mxu0 0
    %332 = vmatpush1.bf16.msra.mxu0 0
    %333 = vmatprep.subr.bf16.mxu0 0
    %334 = vmatpush1.bf16.msra.mxu0 0
    %335 = vmatprep.subr.bf16.mxu0 0
    %336 = vmatpush1.bf16.msra.mxu0 0
    %337 = vmatprep.subr.bf16.mxu0 0
    %338 = vmatpush1.bf16.msra.mxu0 0
    %339 = vmatprep.subr.bf16.mxu0 0
    %340 = vmatpush1.bf16.msra.mxu0 0
    %341 = vmatprep.subr.bf16.mxu0 0
    %342 = vmatpush1.bf16.msra.mxu0 0
    %343 = vmatprep.mubr.bf16.mxu0 0
    %344 = vmatmul.mubr.bf16.gmra.mrb[0].mxu0 %v255
    %v345 = vpop.f32.mrb[0].mxu0
    %v346 = vadd.f32 %v307, %v345
    %v347 = vpop.f32.mrb[0].mxu0
    %v348 = vpop.f32.mrb[0].mxu0
    %v349 = vadd.f32 %v307, %v348
    %v350 = vpop.f32.mrb[0].mxu0
    %351 = vdwg.mxu0
    %v352 = vld [vmem:[%s1] sm:$0xff]
    %v353 = vld [vmem:[%s1 + $0x8] sm:$0xff]
    %v354 = vmul.f32 %v346, 0.5
    %v355 = vmul.f32 %v349, 0.5
    %v356 = vmul.f32 %v354, 1.442695
    %v357 = vpow.pop %v356
    %v358 = vmul.f32 %v355, 1.442695
    %v359 = vpow.pop %v358
    %v360 = vmul.f32 %v352, %v357
    %v361 = vmul.f32 %v353, %v359
    %v362 = vadd.f32 %v360, %v296
    %v363 = vadd.f32 %v361, %v299
    %v364 = vpack.c.bf16 %v363, %v362
    %v365 = vld [vmem:[%s7] sm:$0xf]
    %v366 = vld [vmem:[%s11 + $0x5] sm:$0x1]
    %v367 = vlaneseq
    %v368 = vshrl.u32 %v367, 7
    %v369 = vsub.s32 0, %v368
    %v370 = vrot.slane %v366, %v369
    %v372 = vsel %vm253, %v364, 0
    %v375 = vsel %vm257, %v365, 0
    %377 = vmatprep.subr.bf16.mxu0 0
    %378 = vmatpush1.bf16.msra.mxu0 %v375
    %379 = vmatprep.subr.bf16.mxu0 0
    %380 = vmatpush1.bf16.msra.mxu0 0
    %381 = vmatprep.subr.bf16.mxu0 0
    %382 = vmatpush1.bf16.msra.mxu0 0
    %383 = vmatprep.subr.bf16.mxu0 0
    %384 = vmatpush1.bf16.msra.mxu0 0
    %385 = vmatprep.subr.bf16.mxu0 0
    %386 = vmatpush1.bf16.msra.mxu0 0
    %387 = vmatprep.subr.bf16.mxu0 0
    %388 = vmatpush1.bf16.msra.mxu0 0
    %389 = vmatprep.subr.bf16.mxu0 0
    %390 = vmatpush1.bf16.msra.mxu0 0
    %391 = vmatprep.subr.bf16.mxu0 0
    %392 = vmatpush1.bf16.msra.mxu0 0
    %393 = vmatprep.subr.bf16.mxu0 0
    %394 = vmatpush1.bf16.msra.mxu0 0
    %395 = vmatprep.subr.bf16.mxu0 0
    %396 = vmatpush1.bf16.msra.mxu0 0
    %397 = vmatprep.subr.bf16.mxu0 0
    %398 = vmatpush1.bf16.msra.mxu0 0
    %399 = vmatprep.subr.bf16.mxu0 0
    %400 = vmatpush1.bf16.msra.mxu0 0
    %401 = vmatprep.subr.bf16.mxu0 0
    %402 = vmatpush1.bf16.msra.mxu0 0
    %403 = vmatprep.subr.bf16.mxu0 0
    %404 = vmatpush1.bf16.msra.mxu0 0
    %405 = vmatprep.subr.bf16.mxu0 0
    %406 = vmatpush1.bf16.msra.mxu0 0
    %407 = vmatprep.subr.bf16.mxu0 0
    %408 = vmatpush1.bf16.msra.mxu0 0
    %409 = vmatprep.mubr.bf16.mxu0 0
    %410 = vmatmul.mubr.bf16.gmra.mrb[0].mxu0 %v372
    %v411 = vpop.f32.mrb[0].mxu0
    %v412 = vadd.f32 %v370, %v411
    %v413 = vpop.f32.mrb[0].mxu0
    %v414 = vpop.f32.mrb[0].mxu0
    %v415 = vadd.f32 %v370, %v414
    %v416 = vpop.f32.mrb[0].mxu0
    %417 = vdwg.mxu0
    %v418 = vmax.f32 %v412, 0.0
    %v419 = vmax.f32 %v415, 0.0
    %v420 = vpack.c.bf16 %v419, %v418
    %v421 = vld [vmem:[%s8] sm:$0xf]
    %v422 = vld [vmem:[%s11 + $0x6] sm:$0x1]
    %v423 = vlaneseq
    %v424 = vshrl.u32 %v423, 7
    %v425 = vsub.s32 0, %v424
    %v426 = vrot.slane %v422, %v425
    %v428 = vsel %vm253, %v420, 0
    %v431 = vsel %vm257, %v421, 0
    %433 = vmatprep.subr.bf16.mxu0 0
    %434 = vmatpush1.bf16.msra.mxu0 %v431
    %435 = vmatprep.subr.bf16.mxu0 0
    %436 = vmatpush1.bf16.msra.mxu0 0
    %437 = vmatprep.subr.bf16.mxu0 0
    %438 = vmatpush1.bf16.msra.mxu0 0
    %439 = vmatprep.subr.bf16.mxu0 0
    %440 = vmatpush1.bf16.msra.mxu0 0
    %441 = vmatprep.subr.bf16.mxu0 0
    %442 = vmatpush1.bf16.msra.mxu0 0
    %443 = vmatprep.subr.bf16.mxu0 0
    %444 = vmatpush1.bf16.msra.mxu0 0
    %445 = vmatprep.subr.bf16.mxu0 0
    %446 = vmatpush1.bf16.msra.mxu0 0
    %447 = vmatprep.subr.bf16.mxu0 0
    %448 = vmatpush1.bf16.msra.mxu0 0
    %449 = vmatprep.subr.bf16.mxu0 0
    %450 = vmatpush1.bf16.msra.mxu0 0
    %451 = vmatprep.subr.bf16.mxu0 0
    %452 = vmatpush1.bf16.msra.mxu0 0
    %453 = vmatprep.subr.bf16.mxu0 0
    %454 = vmatpush1.bf16.msra.mxu0 0
    %455 = vmatprep.subr.bf16.mxu0 0
    %456 = vmatpush1.bf16.msra.mxu0 0
    %457 = vmatprep.subr.bf16.mxu0 0
    %458 = vmatpush1.bf16.msra.mxu0 0
    %459 = vmatprep.subr.bf16.mxu0 0
    %460 = vmatpush1.bf16.msra.mxu0 0
    %461 = vmatprep.subr.bf16.mxu0 0
    %462 = vmatpush1.bf16.msra.mxu0 0
    %463 = vmatprep.subr.bf16.mxu0 0
    %464 = vmatpush1.bf16.msra.mxu0 0
    %465 = vmatprep.mubr.bf16.mxu0 0
    %466 = vmatmul.mubr.bf16.gmra.mrb[0].mxu0 %v428
    %v467 = vpop.f32.mrb[0].mxu0
    %v468 = vadd.f32 %v426, %v467
    %v469 = vpop.f32.mrb[0].mxu0
    %v470 = vpop.f32.mrb[0].mxu0
    %v471 = vadd.f32 %v426, %v470
    %v472 = vpop.f32.mrb[0].mxu0
    %473 = vdwg.mxu0
    %v474 = vmax.f32 %v468, 0.0
    %v475 = vmax.f32 %v471, 0.0
    %v476 = vpack.c.bf16 %v475, %v474
    %v477 = vld [vmem:[%s9] sm:$0xf]
    %v478 = vld [vmem:[%s9 + $0x4] sm:$0xf]
    %v479 = vld [vmem:[%s11 + $0x7] sm:$0x1]
    %v480 = vlaneseq
    %v481 = vshrl.u32 %v480, 7
    %v482 = vsub.s32 0, %v481
    %v483 = vrot.slane %v479, %v482
    %v486 = vunpack.c.l.b16 %v477
    %v487 = vunpack.c.l.b16 %v478
    %v488 = vpack.c.b16 %v487, %v486
    %v491 = vsel %vm199, %v476, 0
    %493 = vmatprep.subr.bf16.mxu0 0
    %494 = vmatpush1.bf16.msra.mxu0 %v488
    %495 = vmatprep.subr.bf16.mxu0 0
    %496 = vmatpush1.bf16.msra.mxu0 0
    %497 = vmatprep.subr.bf16.mxu0 0
    %498 = vmatpush1.bf16.msra.mxu0 0
    %499 = vmatprep.subr.bf16.mxu0 0
    %500 = vmatpush1.bf16.msra.mxu0 0
    %501 = vmatprep.subr.bf16.mxu0 0
    %502 = vmatpush1.bf16.msra.mxu0 0
    %503 = vmatprep.subr.bf16.mxu0 0
    %504 = vmatpush1.bf16.msra.mxu0 0
    %505 = vmatprep.subr.bf16.mxu0 0
    %506 = vmatpush1.bf16.msra.mxu0 0
    %507 = vmatprep.subr.bf16.mxu0 0
    %508 = vmatpush1.bf16.msra.mxu0 0
    %509 = vmatprep.subr.bf16.mxu0 0
    %510 = vmatpush1.bf16.msra.mxu0 0
    %511 = vmatprep.subr.bf16.mxu0 0
    %512 = vmatpush1.bf16.msra.mxu0 0
    %513 = vmatprep.subr.bf16.mxu0 0
    %514 = vmatpush1.bf16.msra.mxu0 0
    %515 = vmatprep.subr.bf16.mxu0 0
    %516 = vmatpush1.bf16.msra.mxu0 0
    %517 = vmatprep.subr.bf16.mxu0 0
    %518 = vmatpush1.bf16.msra.mxu0 0
    %519 = vmatprep.subr.bf16.mxu0 0
    %520 = vmatpush1.bf16.msra.mxu0 0
    %521 = vmatprep.subr.bf16.mxu0 0
    %522 = vmatpush1.bf16.msra.mxu0 0
    %523 = vmatprep.subr.bf16.mxu0 0
    %524 = vmatpush1.bf16.msra.mxu0 0
    %525 = vmatprep.mubr.bf16.mxu0 0
    %526 = vmatmul.mubr.bf16.gmra.mrb[0].mxu0 %v491
    %v527 = vpop.f32.mrb[0].mxu0
    %v528 = vadd.f32 %v483, %v527
    %v529 = vpop.f32.mrb[0].mxu0
    %v530 = vpop.f32.mrb[0].mxu0
    %v531 = vadd.f32 %v483, %v530
    %v532 = vpop.f32.mrb[0].mxu0
    %533 = vdwg.mxu0
    %v534 = vmax.f32 %v528, 0.0
    %v535 = vmax.f32 %v531, 0.0
    %v536 = vpack.c.bf16 %v535, %v534
    %v537 = vld [vmem:[%s10] sm:$0xf]
    %v538 = vld [vmem:[%s10 + $0x4] sm:$0xf]
    %v539 = vld [vmem:[%s10 + $0x8] sm:$0xf]
    %v540 = vld [vmem:[%s10 + $0xc] sm:$0xf]
    %v541 = vld [vmem:[%s11 + $0x8] sm:$0x1]
    %v542 = vlaneseq
    %v543 = vshrl.u32 %v542, 7
    %v544 = vsub.s32 0, %v543
    %v545 = vrot.slane %v541, %v544
    %v550 = vunpack.c.l.b16 %v537
    %v551 = vunpack.c.l.b16 %v538
    %v552 = vunpack.c.l.b16 %v539
    %v553 = vunpack.c.l.b16 %v540
    %v554 = vpack.c.b16 %v551, %v550
    %v555 = vpack.c.b16 %v553, %v552
    %v559 = vsel %vm70, %v536, 0
    %561 = vmatprep.subr.bf16.mxu0 0
    %562 = vmatpush1.bf16.msra.mxu0 %v554
    %563 = vmatprep.subr.bf16.mxu0 0
    %564 = vmatpush1.bf16.msra.mxu0 %v555
    %565 = vmatprep.subr.bf16.mxu0 0
    %566 = vmatpush1.bf16.msra.mxu0 0
    %567 = vmatprep.subr.bf16.mxu0 0
    %568 = vmatpush1.bf16.msra.mxu0 0
    %569 = vmatprep.subr.bf16.mxu0 0
    %570 = vmatpush1.bf16.msra.mxu0 0
    %571 = vmatprep.subr.bf16.mxu0 0
    %572 = vmatpush1.bf16.msra.mxu0 0
    %573 = vmatprep.subr.bf16.mxu0 0
    %574 = vmatpush1.bf16.msra.mxu0 0
    %575 = vmatprep.subr.bf16.mxu0 0
    %576 = vmatpush1.bf16.msra.mxu0 0
    %577 = vmatprep.subr.bf16.mxu0 0
    %578 = vmatpush1.bf16.msra.mxu0 0
    %579 = vmatprep.subr.bf16.mxu0 0
    %580 = vmatpush1.bf16.msra.mxu0 0
    %581 = vmatprep.subr.bf16.mxu0 0
    %582 = vmatpush1.bf16.msra.mxu0 0
    %583 = vmatprep.subr.bf16.mxu0 0
    %584 = vmatpush1.bf16.msra.mxu0 0
    %585 = vmatprep.subr.bf16.mxu0 0
    %586 = vmatpush1.bf16.msra.mxu0 0
    %587 = vmatprep.subr.bf16.mxu0 0
    %588 = vmatpush1.bf16.msra.mxu0 0
    %589 = vmatprep.subr.bf16.mxu0 0
    %590 = vmatpush1.bf16.msra.mxu0 0
    %591 = vmatprep.subr.bf16.mxu0 0
    %592 = vmatpush1.bf16.msra.mxu0 0
    %593 = vmatprep.mubr.bf16.mxu0 0
    %594 = vmatmul.mubr.bf16.gmra.mrb[0].mxu0 %v559
    %v595 = vpop.f32.mrb[0].mxu0
    %v596 = vadd.f32 %v545, %v595
    %v597 = vpop.f32.mrb[0].mxu0
    %v598 = vpop.f32.mrb[0].mxu0
    %v599 = vadd.f32 %v545, %v598
    %v600 = vpop.f32.mrb[0].mxu0
    %601 = vdwg.mxu0
    %602 = vst.msk [vmem:[#allocation2] sm:$0xff] %vm70, %v596
    %603 = vst.msk [vmem:[#allocation2 + $0x8] sm:$0xff] %vm70, %v599
    %604 = vst.msk [vmem:[%s13] sm:$0xff] %vm253, %v296
    %605 = vst.msk [vmem:[%s13 + $0x8] sm:$0xff] %vm253, %v299
    %606 = vst.msk [vmem:[%s14] sm:$0xff] %vm253, %v346
    %607 = vst.msk [vmem:[%s14 + $0x8] sm:$0xff] %vm253, %v349
    // Predicated region
    $region50: #{tpu_custom_call.1} parent=1 // pred_check
      _
    $region51: #{tpu_custom_call.1} parent=1 // pred_check_branch
      %609 = sbr.rel (0) target = $region53
    $region52: #{tpu_custom_call.1} parent=1 // pred_region
      %s611 = ssub.s32 256, 256
      %612 = vsyncadd [#allocation3], %s611
      %s613 = sshll.u32 [#allocation2], 4
      %s614 = int_to_ptr.vmem [resolvable:$true] %s613
      %619 = dma.vmem_to_hbm [thread:$0]  %s614, 256, %s12, [#allocation3], 128, 128, 8
    $region53: #{tpu_custom_call.1} parent=1 // pred_fallthru
      _
    // Predicated region
    $region54: #{tpu_custom_call.1} parent=1 // pred_check
      _
    $region55: #{tpu_custom_call.1} parent=1 // pred_check_branch
      %621 = sbr.rel (0) target = $region57
    $region56: #{tpu_custom_call.1} parent=1 // pred_region
      _
    $region57: #{tpu_custom_call.1} parent=1 // pred_fallthru
      _
    // Predicated region
    $region58: #{tpu_custom_call.1} parent=1 // pred_check
      _
    $region59: #{tpu_custom_call.1} parent=1 // pred_check_branch
      %623 = sbr.rel (0) target = $region61
    $region60: #{tpu_custom_call.1} parent=1 // pred_region
      _
    $region61: #{tpu_custom_call.1} parent=1 // pred_fallthru
      _
    // Predicated region
    $region62: #{tpu_custom_call.1} parent=1 // pred_check
      _
    $region63: #{tpu_custom_call.1} parent=1 // pred_check_branch
      %625 = sbr.rel (0) target = $region65
    $region64: #{tpu_custom_call.1} parent=1 // pred_region
      %626 = dma.done [#allocation3], 256
    $region65: #{tpu_custom_call.1} parent=1 // pred_fallthru
      _
    // Predicated region
    $region66: #{tpu_custom_call.1} parent=1 // pred_check
      _
    $region67: #{tpu_custom_call.1} parent=1 // pred_check_branch
      %628 = sbr.rel (0) target = $region69
    $region68: #{tpu_custom_call.1} parent=1 // pred_region
      _
    $region69: #{tpu_custom_call.1} parent=1 // pred_fallthru
      _
    // Predicated region
    $region70: #{tpu_custom_call.1} parent=1 // pred_check
      _
    $region71: #{tpu_custom_call.1} parent=1 // pred_check_branch
      %630 = sbr.rel (0) target = $region73
    $region72: #{tpu_custom_call.1} parent=1 // pred_region
      _
    $region73: #{tpu_custom_call.1} parent=1 // pred_fallthru
      _
    %631 = vsyncpa [#allocation3], 1

</llo_original>
